<compile_context>
chip_gen: v5e
topology: v5e:2x2
jax: 0.10.0
libtpu: 0.0.40
codegen_flags: <defaults>
</compile_context>

<pallas_src>
import functools

import jax
import jax.numpy as jnp
import numpy as np
from jax import lax
from jax.experimental import pallas as pl
from jax.experimental.pallas import tpu as pltpu

LANE = 128
NEG = -1e30          # pad-lane logit value (ignored by softmax / log-softmax)


def _round_up(x, m):
    return (x + m - 1) // m * m


def _pad2(x, rows, cols):
    return jnp.pad(x, ((0, rows - x.shape[0]), (0, cols - x.shape[1])))


# --------------------------------------------------------------------------
# one-time parameter packing (all transposes / padding hoisted off the hot path)
# --------------------------------------------------------------------------
def prepare_params(params, compute_dtype=jnp.float32):
    """Pack weights with per-segment 128-lane padding.

    compute_dtype: use jnp.bfloat16 at realistic hidden/vocab sizes for MXU
    throughput + VMEM residency; f32 here for tight demo validation.
    """
    emb = params["embedding"]        # (V, H)
    W_attn = params["W_attn"]        # (L, 2H)
    W_comb = params["W_combine"]     # (H, 2H)
    W_ih = params["W_ih"]            # (3H, H)
    W_hh = params["W_hh"]            # (3H, H)
    W_out = params["W_out"]          # (V, H)
    V, H = emb.shape
    L = W_attn.shape[0]
    H_SEG = _round_up(H, LANE)
    ATTN_SEG = _round_up(L, LANE)
    V_PAD = _round_up(V, LANE)

    wa = W_attn.T                    # (2H, L)   rows [:H] emb half, [H:] hidden half
    wc = W_comb.T                    # (2H, H)
    wih = W_ih.T                     # (H, 3H)
    whh = W_hh.T                     # (H, 3H)

    # embedded-LHS pack: [ attn(emb half) | combine(emb half) ]
    w_emb = jnp.concatenate([_pad2(wa[:H], H, ATTN_SEG),
                             _pad2(wc[:H], H, H_SEG)], axis=1)
    b_attn_pad = jnp.full((1, ATTN_SEG), NEG, jnp.float32).at[0, :L].set(params["b_attn"])
    b_comb_pad = jnp.zeros((1, H_SEG), jnp.float32).at[0, :H].set(params["b_combine"])
    b_emb = jnp.concatenate([b_attn_pad, b_comb_pad], axis=1)

    # hidden-LHS pack: [ attn(hidden half) | hh_r | hh_z | hh_n ]
    w_hid = jnp.concatenate(
        [_pad2(wa[H:], H_SEG, ATTN_SEG)]
        + [_pad2(whh[:, g * H:(g + 1) * H], H_SEG, H_SEG) for g in range(3)], axis=1)
    b_hh = params["b_hh"]
    b_hid = jnp.concatenate(
        [jnp.zeros((1, ATTN_SEG), jnp.float32)]
        + [jnp.zeros((1, H_SEG), jnp.float32).at[0, :H].set(b_hh[g * H:(g + 1) * H])
           for g in range(3)], axis=1)

    # x-LHS pack: [ ih_r | ih_z | ih_n ]
    w_ih = jnp.concatenate(
        [_pad2(wih[:, g * H:(g + 1) * H], H_SEG, H_SEG) for g in range(3)], axis=1)
    b_ih_v = params["b_ih"]
    b_ih = jnp.concatenate(
        [jnp.zeros((1, H_SEG), jnp.float32).at[0, :H].set(b_ih_v[g * H:(g + 1) * H])
         for g in range(3)], axis=1)

    # attn_combine's encoder half — folded into encoder outputs once per call
    wc_h = _pad2(wc[H:], H, H_SEG)                                   # (H, H_SEG)

    # output projection, lane-dense; padded logit lanes pinned to NEG via bias
    w_out = _pad2(W_out.T, H_SEG, V_PAD)                             # (H_SEG, V_PAD)
    b_out = jnp.full((1, V_PAD), NEG, jnp.float32).at[0, :V].set(params["b_out"])

    cd = compute_dtype
    return dict(emb=emb.astype(cd),
                w_emb=w_emb.astype(cd), b_emb=b_emb,
                w_hid=w_hid.astype(cd), b_hid=b_hid,
                w_ih=w_ih.astype(cd), b_ih=b_ih,
                wc_h=wc_h.astype(cd),
                w_out=w_out.astype(cd), b_out=b_out)


# --------------------------------------------------------------------------
# fused kernel: batched pre-phase -> serial fori_loop recurrence -> batched tail
# --------------------------------------------------------------------------
def _decoder_kernel(T, H_SEG, ATTN_SEG,
                    emb_rows_ref,                 # (T, H)        gathered embedding rows
                    hid0_ref,                     # (1, H_SEG)    initial hidden (zero-padded)
                    enc_wc_ref,                   # (ATTN_SEG, H_SEG) enc @ wc_h (pre-folded)
                    w_emb_ref, b_emb_ref,         # (H, ATTN_SEG+H_SEG), (1, ·)
                    w_hid_ref, b_hid_ref,         # (H_SEG, ATTN_SEG+3*H_SEG), (1, ·)
                    w_ih_ref, b_ih_ref,           # (H_SEG, 3*H_SEG), (1, ·)
                    w_out_ref, b_out_ref,         # (H_SEG, V_PAD), (1, V_PAD)
                    logp_ref,                     # out (T, V_PAD)
                    hid_out_ref,                  # out (1, H_SEG)
                    attn_ref,                     # out (T, ATTN_SEG)
                    emb_proj_s,                   # scratch VMEM (T, ATTN_SEG+H_SEG) f32
                    h_all):                       # scratch VMEM (T, H_SEG) f32
    cd = w_emb_ref.dtype

    # ---- phase 0 (batched, off the serial chain): embedding projection for all T
    emb_proj_s[...] = jnp.dot(emb_rows_ref[...], w_emb_ref[...],
                              preferred_element_type=jnp.float32) + b_emb_ref[...]
    # TODO(synk): nn.Dropout(p=0.1) is identity in eval mode; training-time mask not applied.

    # ---- phase 1: serial attention + GRU recurrence (in-kernel loop, no grid overhead)
    def step(t, h):
        # one MXU dot per distinct LHS; gate/segment slices are all lane-aligned
        hid_proj = jnp.dot(h.astype(cd), w_hid_ref[...],
                           preferred_element_type=jnp.float32) + b_hid_ref[...]
        ep = emb_proj_s[pl.ds(t, 1), :]                                # (1, ATTN_SEG+H_SEG)

        # attention softmax; padded lanes carry -1e30 from b_emb -> exact zeros
        logits = ep[:, 0:ATTN_SEG] + hid_proj[:, 0:ATTN_SEG]
        m = jnp.max(logits, axis=1, keepdims=True)
        e = jnp.exp(logits - m)
        attn_w = e / jnp.sum(e, axis=1, keepdims=True)                 # exact normalization
        attn_ref[pl.ds(t, 1), :] = attn_w

        # context with attn_combine's encoder half pre-folded into enc_wc
        ctx = jnp.dot(attn_w.astype(cd), enc_wc_ref[...],
                      preferred_element_type=jnp.float32)              # (1, H_SEG)
        x = jnp.maximum(ep[:, ATTN_SEG:ATTN_SEG + H_SEG] + ctx, 0.0)   # relu(attn_combine)

        # GRU cell (PyTorch gate order r, z, n)
        gi = jnp.dot(x.astype(cd), w_ih_ref[...],
                     preferred_element_type=jnp.float32) + b_ih_ref[...]
        r = jax.nn.sigmoid(gi[:, 0:H_SEG]
                           + hid_proj[:, ATTN_SEG:ATTN_SEG + H_SEG])
        z = jax.nn.sigmoid(gi[:, H_SEG:2 * H_SEG]
                           + hid_proj[:, ATTN_SEG + H_SEG:ATTN_SEG + 2 * H_SEG])
        n = jnp.tanh(gi[:, 2 * H_SEG:3 * H_SEG]
                     + r * hid_proj[:, ATTN_SEG + 2 * H_SEG:ATTN_SEG + 3 * H_SEG])
        h_new = (1.0 - z) * n + z * h                                  # (1, H_SEG)
        h_all[pl.ds(t, 1), :] = h_new
        return h_new

    h_final = lax.fori_loop(0, T, step, hid0_ref[...], unroll=True)
    hid_out_ref[...] = h_final

    # ---- phase 2 (batched): output projection + log_softmax for all T at once
    out_logits = jnp.dot(h_all[...].astype(cd), w_out_ref[...],
                         preferred_element_type=jnp.float32) + b_out_ref[...]   # (T, V_PAD)
    mo = jnp.max(out_logits, axis=1, keepdims=True)
    lse = jnp.log(jnp.sum(jnp.exp(out_logits - mo), axis=1, keepdims=True)) + mo
    logp_ref[...] = out_logits - lse


# --------------------------------------------------------------------------
# wrappers
# --------------------------------------------------------------------------
@jax.jit
def attn_decoder_decode(tokens, hidden, encoder_outputs, prepared):
    """Run T teacher-forced decode steps in one fused pallas_call.

    tokens: int32 [T]; hidden: f32 [1,1,H]; encoder_outputs: f32 [L,H].
    Returns (log_probs [T,V], new_hidden [1,1,H], attn_weights [T,L]).
    """
    V, H = prepared["emb"].shape
    L = encoder_outputs.shape[0]
    T = tokens.shape[0]
    H_SEG = prepared["wc_h"].shape[1]
    ATTN_SEG = prepared["w_emb"].shape[1] - H_SEG
    V_PAD = prepared["w_out"].shape[1]
    cd = prepared["w_emb"].dtype

    # guard OOB ids (PyTorch would raise; clamping keeps the kernel safe)
    tokens = jnp.clip(tokens.astype(jnp.int32), 0, V - 1)

    # embedding gather for all steps — off the serial chain
    emb_rows = jnp.take(prepared["emb"], tokens, axis=0)               # (T, H)
    # zero-padded initial hidden (padded lanes provably stay 0 through the GRU)
    hid0 = jnp.zeros((1, H_SEG), jnp.float32).at[:, :H].set(hidden.reshape(1, H))
    # fold attn_combine's encoder half into the encoder outputs once per call
    enc_pad = jnp.zeros((ATTN_SEG, H), cd).at[:L, :].set(encoder_outputs.astype(cd))
    enc_wc = jnp.dot(enc_pad, prepared["wc_h"],
                     preferred_element_type=jnp.float32).astype(cd)    # (ATTN_SEG, H_SEG)

    kernel = functools.partial(_decoder_kernel, T, H_SEG, ATTN_SEG)
    logp, h_out, attn = pl.pallas_call(
        kernel,
        out_shape=(jax.ShapeDtypeStruct((T, V_PAD), jnp.float32),
                   jax.ShapeDtypeStruct((1, H_SEG), jnp.float32),
                   jax.ShapeDtypeStruct((T, ATTN_SEG), jnp.float32)),
        scratch_shapes=[pltpu.VMEM((T, ATTN_SEG + H_SEG), jnp.float32),
                        pltpu.VMEM((T, H_SEG), jnp.float32)],
        # no grid: everything (weights + all T steps) fits VMEM at these sizes;
        # at realistic vocab sizes the phase-2 projection would get its own
        # V-tiled, "parallel" grid axis (and bf16 weights) instead.
    )(emb_rows, hid0, enc_wc,
      prepared["w_emb"], prepared["b_emb"],
      prepared["w_hid"], prepared["b_hid"],
      prepared["w_ih"], prepared["b_ih"],
      prepared["w_out"], prepared["b_out"])

    return logp[:, :V], h_out[:, :H].reshape(1, 1, H), attn[:, :L]


def attn_decoder_forward(token, hidden, encoder_outputs, prepared):
    """Single decode step == AttnDecoderRNN.forward (eval mode)."""
    logp, h_new, attn_w = attn_decoder_decode(token.reshape(1), hidden,
                                              encoder_outputs, prepared)
    return logp, h_new, attn_w                       # (1,V), (1,1,H), (1,L)


# --------------------------------------------------------------------------
# pure-JAX reference (mirrors the PyTorch forward, dropout in eval mode)
# --------------------------------------------------------------------------
def _reference_forward(token, hidden, encoder_outputs, params):
    H = hidden.shape[-1]
    embedded = params["embedding"][token[0]].reshape(1, H)
    hid = hidden.reshape(1, H)
    cat1 = jnp.concatenate([embedded, hid], axis=1)
    attn_w = jax.nn.softmax(cat1 @ params["W_attn"].T + params["b_attn"], axis=1)
    attn_applied = attn_w @ encoder_outputs
    cat2 = jnp.concatenate([embedded, attn_applied], axis=1)
    x = jax.nn.relu(cat2 @ params["W_combine"].T + params["b_combine"])
    gi = x @ params["W_ih"].T + params["b_ih"]
    gh = hid @ params["W_hh"].T + params["b_hh"]
    i_r, i_z, i_n = jnp.split(gi, 3, axis=1)
    h_r, h_z, h_n = jnp.split(gh, 3, axis=1)
    r = jax.nn.sigmoid(i_r + h_r)
    z = jax.nn.sigmoid(i_z + h_z)
    n = jnp.tanh(i_n + r * h_n)
    h_new = (1.0 - z) * n + z * hid
    logits = h_new @ params["W_out"].T + params["b_out"]
    logp = jax.nn.log_softmax(logits, axis=1)
    return logp, h_new.reshape(1, 1, H), attn_w


if __name__ == "__main__":
    H = 32        # hidden_size (small demo; module default is 256)
    V = 48        # output_size (vocab)
    L = 10        # max_length
    T = 5         # fused teacher-forced decode steps

    key = jax.random.PRNGKey(0)
    ks = jax.random.split(key, 14)
    s = 0.1
    params = {
        "embedding": s * jax.random.normal(ks[0], (V, H), jnp.float32),
        "W_attn":    s * jax.random.normal(ks[1], (L, 2 * H), jnp.float32),
        "b_attn":    s * jax.random.normal(ks[2], (L,), jnp.float32),
        "W_combine": s * jax.random.normal(ks[3], (H, 2 * H), jnp.float32),
        "b_combine": s * jax.random.normal(ks[4], (H,), jnp.float32),
        "W_ih":      s * jax.random.normal(ks[5], (3 * H, H), jnp.float32),
        "b_ih":      s * jax.random.normal(ks[6], (3 * H,), jnp.float32),
        "W_hh":      s * jax.random.normal(ks[7], (3 * H, H), jnp.float32),
        "b_hh":      s * jax.random.normal(ks[8], (3 * H,), jnp.float32),
        "W_out":     s * jax.random.normal(ks[9], (V, H), jnp.float32),
        "b_out":     s * jax.random.normal(ks[10], (V,), jnp.float32),
    }
    # f32 for tight validation at demo sizes; pass jnp.bfloat16 at realistic sizes.
    prepared = prepare_params(params, compute_dtype=jnp.float32)

    token = jnp.array([3], dtype=jnp.int32)
    hidden = 0.5 * jax.random.normal(ks[11], (1, 1, H), jnp.float32)
    encoder_outputs = jax.random.normal(ks[12], (L, H), jnp.float32)

    # ---- single step (module-equivalent forward) ----
    logp, h_new, attn_w = attn_decoder_forward(token, hidden, encoder_outputs, prepared)
    jax.block_until_ready((logp, h_new, attn_w))
    r_logp, r_h, r_attn = _reference_forward(token, hidden, encoder_outputs, params)
    np.testing.assert_allclose(np.asarray(logp), np.asarray(r_logp), rtol=2e-3, atol=2e-3)
    np.testing.assert_allclose(np.asarray(h_new), np.asarray(r_h), rtol=2e-3, atol=2e-3)
    np.testing.assert_allclose(np.asarray(attn_w), np.asarray(r_attn), rtol=2e-3, atol=2e-3)

    # ---- fused T-step teacher-forced decode (one pallas_call) ----
    tokens = jnp.array([3, 17, 0, 47, 5], dtype=jnp.int32)
    logps, h_T, attns = attn_decoder_decode(tokens, hidden, encoder_outputs, prepared)
    jax.block_until_ready((logps, h_T, attns))

    ref_lp, ref_attn, rh = [], [], hidden
    for t in range(T):
        lp, rh, aw = _reference_forward(tokens[t:t + 1], rh, encoder_outputs, params)
        ref_lp.append(lp)
        ref_attn.append(aw)
    np.testing.assert_allclose(np.asarray(logps), np.concatenate(ref_lp, 0),
                               rtol=2e-3, atol=2e-3)
    np.testing.assert_allclose(np.asarray(h_T), np.asarray(rh), rtol=2e-3, atol=2e-3)
    np.testing.assert_allclose(np.asarray(attns), np.concatenate(ref_attn, 0),
                               rtol=2e-3, atol=2e-3)

    print("KERNEL_OK")
</pallas_src>

<mosaic_0001>
module attributes {stable_mosaic.version = 11 : i64} {
  func.func @_decoder_kernel(%arg0: memref<1x32xf32, #tpu.memory_space<vmem>>, %arg1: memref<1x128xf32, #tpu.memory_space<vmem>>, %arg2: memref<128x128xf32, #tpu.memory_space<vmem>>, %arg3: memref<32x256xf32, #tpu.memory_space<vmem>>, %arg4: memref<1x256xf32, #tpu.memory_space<vmem>>, %arg5: memref<128x512xf32, #tpu.memory_space<vmem>>, %arg6: memref<1x512xf32, #tpu.memory_space<vmem>>, %arg7: memref<128x384xf32, #tpu.memory_space<vmem>>, %arg8: memref<1x384xf32, #tpu.memory_space<vmem>>, %arg9: memref<128x128xf32, #tpu.memory_space<vmem>>, %arg10: memref<1x128xf32, #tpu.memory_space<vmem>>, %arg11: memref<1x128xf32, #tpu.memory_space<vmem>>, %arg12: memref<1x128xf32, #tpu.memory_space<vmem>>, %arg13: memref<1x128xf32, #tpu.memory_space<vmem>>, %arg14: memref<1x256xf32, #tpu.memory_space<vmem>>, %arg15: memref<1x128xf32, #tpu.memory_space<vmem>>) attributes {dimension_semantics = [], scalar_prefetch = 0 : i64, scratch_operands = 2 : i64, tpu.core_type = #tpu.core_type<tc>} {
    %c0 = arith.constant 0 : index
    %c0_0 = arith.constant 0 : index
    %0 = vector.load %arg0[%c0, %c0_0] : memref<1x32xf32, #tpu.memory_space<vmem>>, vector<1x32xf32>
    %c0_1 = arith.constant 0 : index
    %c0_2 = arith.constant 0 : index
    %1 = vector.load %arg3[%c0_1, %c0_2] : memref<32x256xf32, #tpu.memory_space<vmem>>, vector<32x256xf32>
    %cst = arith.constant dense<0.000000e+00> : vector<1x256xf32>
    %2 = tpu.matmul %0, %1, %cst {dimension_numbers = #tpu.dot_dimension_numbers<[1], [0], [0], [1], [0, 0, 1, 1], [], []>} : vector<1x32xf32>, vector<32x256xf32>, vector<1x256xf32> -> vector<1x256xf32>
    %c0_3 = arith.constant 0 : index
    %c0_4 = arith.constant 0 : index
    %3 = vector.load %arg4[%c0_3, %c0_4] : memref<1x256xf32, #tpu.memory_space<vmem>>, vector<1x256xf32>
    %4 = arith.addf %2, %3 : vector<1x256xf32>
    %c0_5 = arith.constant 0 : index
    %c0_6 = arith.constant 0 : index
    %5 = vector.load %arg14[%c0_5, %c0_6] : memref<1x256xf32, #tpu.memory_space<vmem>>, vector<1x256xf32>
    tpu.vector_store %arg14[%c0_5, %c0_6], %4 {strides = array<i32>} : memref<1x256xf32, #tpu.memory_space<vmem>>, vector<1x256xf32>,
    %c0_7 = arith.constant 0 : index
    %c0_8 = arith.constant 0 : index
    %6 = vector.load %arg1[%c0_7, %c0_8] : memref<1x128xf32, #tpu.memory_space<vmem>>, vector<1x128xf32>
    %c0_i32 = arith.constant 0 : i32
    %c0_9 = arith.constant 0 : index
    %c0_10 = arith.constant 0 : index
    %7 = vector.load %arg5[%c0_9, %c0_10] : memref<128x512xf32, #tpu.memory_space<vmem>>, vector<128x512xf32>
    %cst_11 = arith.constant dense<0.000000e+00> : vector<1x512xf32>
    %8 = tpu.matmul %6, %7, %cst_11 {dimension_numbers = #tpu.dot_dimension_numbers<[1], [0], [0], [1], [0, 0, 1, 1], [], []>} : vector<1x128xf32>, vector<128x512xf32>, vector<1x512xf32> -> vector<1x512xf32>
    %c0_12 = arith.constant 0 : index
    %c0_13 = arith.constant 0 : index
    %9 = vector.load %arg6[%c0_12, %c0_13] : memref<1x512xf32, #tpu.memory_space<vmem>>, vector<1x512xf32>
    %10 = arith.addf %8, %9 : vector<1x512xf32>
    %11 = arith.index_cast %c0_i32 : i32 to index
    %c0_14 = arith.constant 0 : index
    %12 = vector.load %arg14[%11, %c0_14] : memref<1x256xf32, #tpu.memory_space<vmem>>, vector<1x256xf32>
    %13 = vector.extract_strided_slice %12 {offsets = [0, 0], sizes = [1, 128], strides = [1, 1]} : vector<1x256xf32> to vector<1x128xf32>
    %14 = vector.extract_strided_slice %10 {offsets = [0, 0], sizes = [1, 128], strides = [1, 1]} : vector<1x512xf32> to vector<1x128xf32>
    %15 = arith.addf %13, %14 : vector<1x128xf32>
    %cst_15 = arith.constant dense<0xFF800000> : vector<1xf32>
    %16 = vector.multi_reduction <maximumf>, %15, %cst_15 [1] : vector<1x128xf32> to vector<1xf32>
    %17 = vector.shape_cast %16 : vector<1xf32> to vector<1x1xf32>
    %18 = vector.broadcast %17 : vector<1x1xf32> to vector<1x128xf32>
    %19 = arith.subf %15, %18 : vector<1x128xf32>
    %20 = math.exp %19 : vector<1x128xf32>
    %cst_16 = arith.constant dense<0.000000e+00> : vector<1xf32>
    %21 = vector.multi_reduction <add>, %20, %cst_16 [1] : vector<1x128xf32> to vector<1xf32>
    %22 = vector.shape_cast %21 : vector<1xf32> to vector<1x1xf32>
    %23 = vector.broadcast %22 : vector<1x1xf32> to vector<1x128xf32>
    %24 = arith.divf %20, %23 : vector<1x128xf32>
    %25 = arith.index_cast %c0_i32 : i32 to index
    %c0_17 = arith.constant 0 : index
    %26 = vector.load %arg13[%25, %c0_17] : memref<1x128xf32, #tpu.memory_space<vmem>>, vector<1x128xf32>
    tpu.vector_store %arg13[%25, %c0_17], %24 {strides = array<i32>} : memref<1x128xf32, #tpu.memory_space<vmem>>, vector<1x128xf32>,
    %c0_18 = arith.constant 0 : index
    %c0_19 = arith.constant 0 : index
    %27 = vector.load %arg2[%c0_18, %c0_19] : memref<128x128xf32, #tpu.memory_space<vmem>>, vector<128x128xf32>
    %cst_20 = arith.constant dense<0.000000e+00> : vector<1x128xf32>
    %28 = tpu.matmul %24, %27, %cst_20 {dimension_numbers = #tpu.dot_dimension_numbers<[1], [0], [0], [1], [0, 0, 1, 1], [], []>} : vector<1x128xf32>, vector<128x128xf32>, vector<1x128xf32> -> vector<1x128xf32>
    %29 = vector.extract_strided_slice %12 {offsets = [0, 128], sizes = [1, 128], strides = [1, 1]} : vector<1x256xf32> to vector<1x128xf32>
    %30 = arith.addf %29, %28 : vector<1x128xf32>
    %cst_21 = arith.constant 0.000000e+00 : f32
    %31 = vector.broadcast %cst_21 : f32 to vector<1x128xf32>
    %32 = arith.maximumf %30, %31 : vector<1x128xf32>
    %c0_22 = arith.constant 0 : index
    %c0_23 = arith.constant 0 : index
    %33 = vector.load %arg7[%c0_22, %c0_23] : memref<128x384xf32, #tpu.memory_space<vmem>>, vector<128x384xf32>
    %cst_24 = arith.constant dense<0.000000e+00> : vector<1x384xf32>
    %34 = tpu.matmul %32, %33, %cst_24 {dimension_numbers = #tpu.dot_dimension_numbers<[1], [0], [0], [1], [0, 0, 1, 1], [], []>} : vector<1x128xf32>, vector<128x384xf32>, vector<1x384xf32> -> vector<1x384xf32>
    %c0_25 = arith.constant 0 : index
    %c0_26 = arith.constant 0 : index
    %35 = vector.load %arg8[%c0_25, %c0_26] : memref<1x384xf32, #tpu.memory_space<vmem>>, vector<1x384xf32>
    %36 = arith.addf %34, %35 : vector<1x384xf32>
    %37 = vector.extract_strided_slice %36 {offsets = [0, 0], sizes = [1, 128], strides = [1, 1]} : vector<1x384xf32> to vector<1x128xf32>
    %38 = vector.extract_strided_slice %10 {offsets = [0, 128], sizes = [1, 128], strides = [1, 1]} : vector<1x512xf32> to vector<1x128xf32>
    %39 = arith.addf %37, %38 : vector<1x128xf32>
    %40 = arith.negf %39 : vector<1x128xf32>
    %41 = math.exp %40 : vector<1x128xf32>
    %cst_27 = arith.constant 1.000000e+00 : f32
    %42 = vector.broadcast %cst_27 : f32 to vector<1x128xf32>
    %43 = arith.addf %42, %41 : vector<1x128xf32>
    %44 = arith.divf %42, %43 : vector<1x128xf32>
    %45 = vector.extract_strided_slice %36 {offsets = [0, 128], sizes = [1, 128], strides = [1, 1]} : vector<1x384xf32> to vector<1x128xf32>
    %46 = vector.extract_strided_slice %10 {offsets = [0, 256], sizes = [1, 128], strides = [1, 1]} : vector<1x512xf32> to vector<1x128xf32>
    %47 = arith.addf %45, %46 : vector<1x128xf32>
    %48 = arith.negf %47 : vector<1x128xf32>
    %49 = math.exp %48 : vector<1x128xf32>
    %cst_28 = arith.constant 1.000000e+00 : f32
    %50 = vector.broadcast %cst_28 : f32 to vector<1x128xf32>
    %51 = arith.addf %50, %49 : vector<1x128xf32>
    %52 = arith.divf %50, %51 : vector<1x128xf32>
    %53 = vector.extract_strided_slice %36 {offsets = [0, 256], sizes = [1, 128], strides = [1, 1]} : vector<1x384xf32> to vector<1x128xf32>
    %54 = vector.extract_strided_slice %10 {offsets = [0, 384], sizes = [1, 128], strides = [1, 1]} : vector<1x512xf32> to vector<1x128xf32>
    %55 = arith.mulf %44, %54 : vector<1x128xf32>
    %56 = arith.addf %53, %55 : vector<1x128xf32>
    %57 = math.tanh %56 : vector<1x128xf32>
    %cst_29 = arith.constant 1.000000e+00 : f32
    %58 = vector.broadcast %cst_29 : f32 to vector<1x128xf32>
    %59 = arith.subf %58, %52 : vector<1x128xf32>
    %60 = arith.mulf %59, %57 : vector<1x128xf32>
    %61 = arith.mulf %52, %6 : vector<1x128xf32>
    %62 = arith.addf %60, %61 : vector<1x128xf32>
    %63 = arith.index_cast %c0_i32 : i32 to index
    %c0_30 = arith.constant 0 : index
    %64 = vector.load %arg15[%63, %c0_30] : memref<1x128xf32, #tpu.memory_space<vmem>>, vector<1x128xf32>
    tpu.vector_store %arg15[%63, %c0_30], %62 {strides = array<i32>} : memref<1x128xf32, #tpu.memory_space<vmem>>, vector<1x128xf32>,
    %c1_i32 = arith.constant 1 : i32
    %c0_31 = arith.constant 0 : index
    %c0_32 = arith.constant 0 : index
    %65 = vector.load %arg12[%c0_31, %c0_32] : memref<1x128xf32, #tpu.memory_space<vmem>>, vector<1x128xf32>
    tpu.vector_store %arg12[%c0_31, %c0_32], %62 {strides = array<i32>} : memref<1x128xf32, #tpu.memory_space<vmem>>, vector<1x128xf32>,
    %c0_33 = arith.constant 0 : index
    %c0_34 = arith.constant 0 : index
    %66 = vector.load %arg15[%c0_33, %c0_34] : memref<1x128xf32, #tpu.memory_space<vmem>>, vector<1x128xf32>
    %c0_35 = arith.constant 0 : index
    %c0_36 = arith.constant 0 : index
    %67 = vector.load %arg9[%c0_35, %c0_36] : memref<128x128xf32, #tpu.memory_space<vmem>>, vector<128x128xf32>
    %cst_37 = arith.constant dense<0.000000e+00> : vector<1x128xf32>
    %68 = tpu.matmul %66, %67, %cst_37 {dimension_numbers = #tpu.dot_dimension_numbers<[1], [0], [0], [1], [0, 0, 1, 1], [], []>} : vector<1x128xf32>, vector<128x128xf32>, vector<1x128xf32> -> vector<1x128xf32>
    %c0_38 = arith.constant 0 : index
    %c0_39 = arith.constant 0 : index
    %69 = vector.load %arg10[%c0_38, %c0_39] : memref<1x128xf32, #tpu.memory_space<vmem>>, vector<1x128xf32>
    %70 = arith.addf %68, %69 : vector<1x128xf32>
    %cst_40 = arith.constant dense<0xFF800000> : vector<1xf32>
    %71 = vector.multi_reduction <maximumf>, %70, %cst_40 [1] : vector<1x128xf32> to vector<1xf32>
    %72 = vector.shape_cast %71 : vector<1xf32> to vector<1x1xf32>
    %73 = vector.broadcast %72 : vector<1x1xf32> to vector<1x128xf32>
    %74 = arith.subf %70, %73 : vector<1x128xf32>
    %75 = math.exp %74 : vector<1x128xf32>
    %cst_41 = arith.constant dense<0.000000e+00> : vector<1xf32>
    %76 = vector.multi_reduction <add>, %75, %cst_41 [1] : vector<1x128xf32> to vector<1xf32>
    %77 = vector.shape_cast %76 : vector<1xf32> to vector<1x1xf32>
    %78 = math.log %77 : vector<1x1xf32>
    %79 = arith.addf %78, %72 : vector<1x1xf32>
    %80 = vector.broadcast %79 : vector<1x1xf32> to vector<1x128xf32>
    %81 = arith.subf %70, %80 : vector<1x128xf32>
    %c0_42 = arith.constant 0 : index
    %c0_43 = arith.constant 0 : index
    %82 = vector.load %arg11[%c0_42, %c0_43] : memref<1x128xf32, #tpu.memory_space<vmem>>, vector<1x128xf32>
    tpu.vector_store %arg11[%c0_42, %c0_43], %81 {strides = array<i32>} : memref<1x128xf32, #tpu.memory_space<vmem>>, vector<1x128xf32>,
    return
  }
}

</mosaic_0001>

<llo_original>
// kernel: attn_decoder_decode.1
$region0: #{attn_decoder_decode.1}
  #allocation0 [shape = 'u32[]', space=smem, size = 0x4, offset = 0x4, fixed_abs, tag = 'smem constant byte address 0x4 - core index']
  #allocation1 [shape = 'u32[72,128]{1,0:T(1,128)}', space=vmem, size = 0x9000, scoped, tag = 'internal scratch']
  #allocation2 [shape = 'f32[1,256]{1,0:T(1,128)}', space=vmem, size = 0x400, scoped, tag = 'scratch operand']
  #allocation3 [shape = 'f32[1,128]{1,0:T(1,128)}', space=vmem, size = 0x200, scoped, tag = 'scratch operand']
  %s0 = inlined_call_operand.vmem [shape: f32[1,32], index: 0, kind: input, shape index: {}]
  %s1 = inlined_call_operand.vmem [shape: f32[1,128], index: 1, kind: input, shape index: {}]
  %s2 = inlined_call_operand.vmem [shape: f32[128,128], index: 2, kind: input, shape index: {}]
  %s3 = inlined_call_operand.vmem [shape: f32[32,256], index: 3, kind: input, shape index: {}]
  %s4 = inlined_call_operand.vmem [shape: f32[1,256], index: 4, kind: input, shape index: {}]
  %s5 = inlined_call_operand.hbm [shape: f32[128,512], index: 5, kind: input, shape index: {}]
  %s6 = inlined_call_operand.vmem [shape: f32[1,512], index: 6, kind: input, shape index: {}]
  %s7 = inlined_call_operand.hbm [shape: f32[128,384], index: 7, kind: input, shape index: {}]
  %s8 = inlined_call_operand.vmem [shape: f32[1,384], index: 8, kind: input, shape index: {}]
  %s9 = inlined_call_operand.vmem [shape: f32[128,128], index: 9, kind: input, shape index: {}]
  %s10 = inlined_call_operand.vmem [shape: f32[1,128], index: 10, kind: input, shape index: {}]
  %s11 = inlined_call_operand.hbm [shape: f32[1,128], index: 11, kind: output, shape index: {0}]
  %s12 = inlined_call_operand.vmem [shape: f32[1,128], index: 12, kind: output, shape index: {1}]
  %s13 = inlined_call_operand.hbm [shape: f32[1,128], index: 13, kind: output, shape index: {2}]
  %14 = xla_tuple %s11, %s12, %s13
  %s15 = sld [smem:[#allocation0]]
  $region78: #{attn_decoder_decode.1} parent=0
    _
  %s17 = ssub.s32 1, %s15
  %s18 = scalar_select 0, %s17, %s15
  $region1: #{attn_decoder_decode.1} parent=0
    #allocation4 [shape = 'u8[262144]{0}', space=vmem, size = 0x40000, scoped, tag = 'input window, operand 5, single buffered']
    #allocation5 [shape = 's32[1]{0}', space=sflag, size = 0x4, scoped, tag = 'scoped memory for attn_decoder_decode.1']
    #allocation6 [shape = 's32[1]{0}', space=sflag, size = 0x4, scoped, tag = 'scoped memory for attn_decoder_decode.1']
    #allocation7 [shape = 'u8[196608]{0}', space=vmem, size = 0x30000, scoped, tag = 'input window, operand 7, single buffered']
    #allocation8 [shape = 's32[1]{0}', space=sflag, size = 0x4, scoped, tag = 'scoped memory for attn_decoder_decode.1']
    #allocation9 [shape = 'u8[512]{0}', space=vmem, size = 0x400, scoped, tag = 'output window, operand 0, single buffered']
    #allocation10 [shape = 'u8[512]{0}', space=vmem, size = 0x400, scoped, tag = 'output window, operand 2, single buffered']
    #allocation11 [shape = 's32[1]{0}', space=sflag, size = 0x4, scoped, tag = 'scoped memory for attn_decoder_decode.1']
    %19 = vsyncpa [#allocation5], 0
    %20 = vsyncpa [#allocation8], 0
    %21 = vsyncpa [#allocation6], 0
    %22 = vsyncpa [#allocation11], 0
    // Predicated region
    $region2: #{attn_decoder_decode.1} parent=1 // pred_check
      _
    $region3: #{attn_decoder_decode.1} parent=1 // pred_check_branch
      %24 = sbr.rel (0) target = $region5
    $region4: #{attn_decoder_decode.1} parent=1 // pred_region
      _
    $region5: #{attn_decoder_decode.1} parent=1 // pred_fallthru
      _
    // Predicated region
    $region6: #{attn_decoder_decode.1} parent=1 // pred_check
      _
    $region7: #{attn_decoder_decode.1} parent=1 // pred_check_branch
      %26 = sbr.rel (0) target = $region9
    $region8: #{attn_decoder_decode.1} parent=1 // pred_region
      _
    $region9: #{attn_decoder_decode.1} parent=1 // pred_fallthru
      _
    // Predicated region
    $region10: #{attn_decoder_decode.1} parent=1 // pred_check
      _
    $region11: #{attn_decoder_decode.1} parent=1 // pred_check_branch
      %28 = sbr.rel (0) target = $region13
    $region12: #{attn_decoder_decode.1} parent=1 // pred_region
      _
    $region13: #{attn_decoder_decode.1} parent=1 // pred_fallthru
      _
    // Predicated region
    $region14: #{attn_decoder_decode.1} parent=1 // pred_check
      _
    $region15: #{attn_decoder_decode.1} parent=1 // pred_check_branch
      %30 = sbr.rel (0) target = $region17
    $region16: #{attn_decoder_decode.1} parent=1 // pred_region
      _
    $region17: #{attn_decoder_decode.1} parent=1 // pred_fallthru
      _
    // Predicated region
    $region18: #{attn_decoder_decode.1} parent=1 // pred_check
      _
    $region19: #{attn_decoder_decode.1} parent=1 // pred_check_branch
      %32 = sbr.rel (0) target = $region21
    $region20: #{attn_decoder_decode.1} parent=1 // pred_region
      _
    $region21: #{attn_decoder_decode.1} parent=1 // pred_fallthru
      _
    // Predicated region
    $region22: #{attn_decoder_decode.1} parent=1 // pred_check
      _
    $region23: #{attn_decoder_decode.1} parent=1 // pred_check_branch
      %34 = sbr.rel (0) target = $region25
    $region24: #{attn_decoder_decode.1} parent=1 // pred_region
      %36 = vsyncadd [#allocation5], 0
      %s37 = sshll.u32 %s5, 4
      %s38 = int_to_ptr.hbm [resolvable:$true] %s37
      %s39 = sshll.u32 [#allocation4], 4
      %s40 = int_to_ptr.vmem [resolvable:$true] %s39
      %45 = dma.hbm_to_vmem [thread:$0]  %s38, 8192, %s40, [#allocation5], 512, 512, 32
    $region25: #{attn_decoder_decode.1} parent=1 // pred_fallthru
      _
    // Predicated region
    $region26: #{attn_decoder_decode.1} parent=1 // pred_check
      _
    $region27: #{attn_decoder_decode.1} parent=1 // pred_check_branch
      %47 = sbr.rel (0) target = $region29
    $region28: #{attn_decoder_decode.1} parent=1 // pred_region
      _
    $region29: #{attn_decoder_decode.1} parent=1 // pred_fallthru
      _
    // Predicated region
    $region30: #{attn_decoder_decode.1} parent=1 // pred_check
      _
    $region31: #{attn_decoder_decode.1} parent=1 // pred_check_branch
      %49 = sbr.rel (0) target = $region33
    $region32: #{attn_decoder_decode.1} parent=1 // pred_region
      %51 = vsyncadd [#allocation8], 0
      %s52 = sshll.u32 %s7, 4
      %s53 = int_to_ptr.hbm [resolvable:$true] %s52
      %s54 = sshll.u32 [#allocation7], 4
      %s55 = int_to_ptr.vmem [resolvable:$true] %s54
      %60 = dma.hbm_to_vmem [thread:$0]  %s53, 6144, %s55, [#allocation8], 384, 384, 24
    $region33: #{attn_decoder_decode.1} parent=1 // pred_fallthru
      _
    // Predicated region
    $region34: #{attn_decoder_decode.1} parent=1 // pred_check
      _
    $region35: #{attn_decoder_decode.1} parent=1 // pred_check_branch
      %62 = sbr.rel (0) target = $region37
    $region36: #{attn_decoder_decode.1} parent=1 // pred_region
      _
    $region37: #{attn_decoder_decode.1} parent=1 // pred_fallthru
      _
    // Predicated region
    $region38: #{attn_decoder_decode.1} parent=1 // pred_check
      _
    $region39: #{attn_decoder_decode.1} parent=1 // pred_check_branch
      %64 = sbr.rel (0) target = $region41
    $region40: #{attn_decoder_decode.1} parent=1 // pred_region
      _
    $region41: #{attn_decoder_decode.1} parent=1 // pred_fallthru
      _
    // Predicated region
    $region42: #{attn_decoder_decode.1} parent=1 // pred_check
      _
    $region43: #{attn_decoder_decode.1} parent=1 // pred_check_branch
      %66 = sbr.rel (0) target = $region45
    $region44: #{attn_decoder_decode.1} parent=1 // pred_region
      _
    $region45: #{attn_decoder_decode.1} parent=1 // pred_fallthru
      _
    // Predicated region
    $region46: #{attn_decoder_decode.1} parent=1 // pred_check
      _
    $region47: #{attn_decoder_decode.1} parent=1 // pred_check_branch
      %68 = sbr.rel (0) target = $region49
    $region48: #{attn_decoder_decode.1} parent=1 // pred_region
      %70 = dma.done [#allocation5], 8192
    $region49: #{attn_decoder_decode.1} parent=1 // pred_fallthru
      _
    // Predicated region
    $region50: #{attn_decoder_decode.1} parent=1 // pred_check
      _
    $region51: #{attn_decoder_decode.1} parent=1 // pred_check_branch
      %72 = sbr.rel (0) target = $region53
    $region52: #{attn_decoder_decode.1} parent=1 // pred_region
      %74 = dma.done [#allocation8], 6144
    $region53: #{attn_decoder_decode.1} parent=1 // pred_fallthru
      _
    %v75 = vld [vmem:[%s0] sm:$0x1]
    %v76 = vld [vmem:[%s3] sm:$0xff]
    %v77 = vld [vmem:[%s3 + $0x8] sm:$0xff]
    %v78 = vld [vmem:[%s3 + $0x10] sm:$0xff]
    %v79 = vld [vmem:[%s3 + $0x18] sm:$0xff]
    %v80 = vld [vmem:[%s3 + $0x20] sm:$0xff]
    %v81 = vld [vmem:[%s3 + $0x28] sm:$0xff]
    %v82 = vld [vmem:[%s3 + $0x30] sm:$0xff]
    %v83 = vld [vmem:[%s3 + $0x38] sm:$0xff]
    %v84 = vld [vmem:[%s4] sm:$0x3]
    %v86 = vperm.slane %v84, 0
    %v87 = vperm.slane %v84, 1
    %vm90 = vcmask 261120
    %v92 = vsel %vm90, %v75, 0
    %94 = vmatpush.msra.mxu0 0.0
    %95 = vmatpush.msra.mxu0 0.0
    %96 = vmatpush.msra.mxu0 0.0
    %97 = vmatpush.msra.mxu0 0.0
    %98 = vmatpush.msra.mxu0 0.0
    %99 = vmatpush.msra.mxu0 0.0
    %100 = vmatpush.msra.mxu0 0.0
    %101 = vmatpush.msra.mxu0 0.0
    %102 = vmatpush.msra.mxu0 0.0
    %103 = vmatpush.msra.mxu0 0.0
    %104 = vmatpush.msra.mxu0 0.0
    %105 = vmatpush.msra.mxu0 0.0
    %106 = vmatpush.msra.mxu0 %v82
    %107 = vmatpush.msra.mxu0 %v80
    %108 = vmatpush.msra.mxu0 %v78
    %109 = vmatpush.msra.mxu0 %v76
    %110 = vmatmul.f32.gmra.mxu0 %v92
    %v111 = vpop.f32.mrf.mxu0
    %v112 = vadd.f32 %v86, %v111
    %113 = vdwg.mxu0
    %114 = vmatpush.msra.mxu0 0.0
    %115 = vmatpush.msra.mxu0 0.0
    %116 = vmatpush.msra.mxu0 0.0
    %117 = vmatpush.msra.mxu0 0.0
    %118 = vmatpush.msra.mxu0 0.0
    %119 = vmatpush.msra.mxu0 0.0
    %120 = vmatpush.msra.mxu0 0.0
    %121 = vmatpush.msra.mxu0 0.0
    %122 = vmatpush.msra.mxu0 0.0
    %123 = vmatpush.msra.mxu0 0.0
    %124 = vmatpush.msra.mxu0 0.0
    %125 = vmatpush.msra.mxu0 0.0
    %126 = vmatpush.msra.mxu0 %v83
    %127 = vmatpush.msra.mxu0 %v81
    %128 = vmatpush.msra.mxu0 %v79
    %129 = vmatpush.msra.mxu0 %v77
    %130 = vmatmul.f32.gmra.mxu0 %v92
    %v131 = vpop.f32.mrf.mxu0
    %v132 = vadd.f32 %v87, %v131
    %133 = vdwg.mxu0
    %v136 = vrot.slane %v132, 7
    %vm137 = vcmask 1040384
    %v138 = vsel %vm137, %v112, %v136
    %v140 = vlaneseq
    %vm141 = vcmp.ge.s32.totalorder %v140, 0
    %vm142 = vcmp.lt.s32.totalorder %v140, 256
    %vm143 = vmand %vm141, %vm142
    %144 = vst.msk [vmem:[#allocation2] sm:$0x3] %vm143, %v138
    %v145 = vld [vmem:[%s1] sm:$0x1]
    %v146 = vld [vmem:[#allocation4] sm:$0xff]
    %v147 = vld [vmem:[#allocation4 + $0x8] sm:$0xff]
    %v148 = vld [vmem:[#allocation4 + $0x10] sm:$0xff]
    %v149 = vld [vmem:[#allocation4 + $0x18] sm:$0xff]
    %v150 = vld [vmem:[#allocation4 + $0x20] sm:$0xff]
    %v151 = vld [vmem:[#allocation4 + $0x28] sm:$0xff]
    %v152 = vld [vmem:[#allocation4 + $0x30] sm:$0xff]
    %v153 = vld [vmem:[#allocation4 + $0x38] sm:$0xff]
    %v154 = vld [vmem:[#allocation4 + $0x40] sm:$0xff]
    %v155 = vld [vmem:[#allocation4 + $0x48] sm:$0xff]
    %v156 = vld [vmem:[#allocation4 + $0x50] sm:$0xff]
    %v157 = vld [vmem:[#allocation4 + $0x58] sm:$0xff]
    %v158 = vld [vmem:[#allocation4 + $0x60] sm:$0xff]
    %v159 = vld [vmem:[#allocation4 + $0x68] sm:$0xff]
    %v160 = vld [vmem:[#allocation4 + $0x70] sm:$0xff]
    %v161 = vld [vmem:[#allocation4 + $0x78] sm:$0xff]
    %v162 = vld [vmem:[#allocation4 + $0x80] sm:$0xff]
    %v163 = vld [vmem:[#allocation4 + $0x88] sm:$0xff]
    %v164 = vld [vmem:[#allocation4 + $0x90] sm:$0xff]
    %v165 = vld [vmem:[#allocation4 + $0x98] sm:$0xff]
    %v166 = vld [vmem:[#allocation4 + $0xa0] sm:$0xff]
    %v167 = vld [vmem:[#allocation4 + $0xa8] sm:$0xff]
    %v168 = vld [vmem:[#allocation4 + $0xb0] sm:$0xff]
    %v169 = vld [vmem:[#allocation4 + $0xb8] sm:$0xff]
    %v170 = vld [vmem:[#allocation4 + $0xc0] sm:$0xff]
    %v171 = vld [vmem:[#allocation4 + $0xc8] sm:$0xff]
    %v172 = vld [vmem:[#allocation4 + $0xd0] sm:$0xff]
    %v173 = vld [vmem:[#allocation4 + $0xd8] sm:$0xff]
    %v174 = vld [vmem:[#allocation4 + $0xe0] sm:$0xff]
    %v175 = vld [vmem:[#allocation4 + $0xe8] sm:$0xff]
    %v176 = vld [vmem:[#allocation4 + $0xf0] sm:$0xff]
    %v177 = vld [vmem:[#allocation4 + $0xf8] sm:$0xff]
    %v178 = vld [vmem:[#allocation4 + $0x100] sm:$0xff]
    %v179 = vld [vmem:[#allocation4 + $0x108] sm:$0xff]
    %v180 = vld [vmem:[#allocation4 + $0x110] sm:$0xff]
    %v181 = vld [vmem:[#allocation4 + $0x118] sm:$0xff]
    %v182 = vld [vmem:[#allocation4 + $0x120] sm:$0xff]
    %v183 = vld [vmem:[#allocation4 + $0x128] sm:$0xff]
    %v184 = vld [vmem:[#allocation4 + $0x130] sm:$0xff]
    %v185 = vld [vmem:[#allocation4 + $0x138] sm:$0xff]
    %v186 = vld [vmem:[#allocation4 + $0x140] sm:$0xff]
    %v187 = vld [vmem:[#allocation4 + $0x148] sm:$0xff]
    %v188 = vld [vmem:[#allocation4 + $0x150] sm:$0xff]
    %v189 = vld [vmem:[#allocation4 + $0x158] sm:$0xff]
    %v190 = vld [vmem:[#allocation4 + $0x160] sm:$0xff]
    %v191 = vld [vmem:[#allocation4 + $0x168] sm:$0xff]
    %v192 = vld [vmem:[#allocation4 + $0x170] sm:$0xff]
    %v193 = vld [vmem:[#allocation4 + $0x178] sm:$0xff]
    %v194 = vld [vmem:[#allocation4 + $0x180] sm:$0xff]
    %v195 = vld [vmem:[#allocation4 + $0x188] sm:$0xff]
    %v196 = vld [vmem:[#allocation4 + $0x190] sm:$0xff]
    %v197 = vld [vmem:[#allocation4 + $0x198] sm:$0xff]
    %v198 = vld [vmem:[#allocation4 + $0x1a0] sm:$0xff]
    %v199 = vld [vmem:[#allocation4 + $0x1a8] sm:$0xff]
    %v200 = vld [vmem:[#allocation4 + $0x1b0] sm:$0xff]
    %v201 = vld [vmem:[#allocation4 + $0x1b8] sm:$0xff]
    %v202 = vld [vmem:[#allocation4 + $0x1c0] sm:$0xff]
    %v203 = vld [vmem:[#allocation4 + $0x1c8] sm:$0xff]
    %v204 = vld [vmem:[#allocation4 + $0x1d0] sm:$0xff]
    %v205 = vld [vmem:[#allocation4 + $0x1d8] sm:$0xff]
    %v206 = vld [vmem:[#allocation4 + $0x1e0] sm:$0xff]
    %v207 = vld [vmem:[#allocation4 + $0x1e8] sm:$0xff]
    %v208 = vld [vmem:[#allocation4 + $0x1f0] sm:$0xff]
    %v209 = vld [vmem:[#allocation4 + $0x1f8] sm:$0xff]
    %v210 = vld [vmem:[%s6] sm:$0xf]
    %v212 = vperm.slane %v210, 0
    %v213 = vperm.slane %v210, 1
    %v214 = vperm.slane %v210, 2
    %v215 = vperm.slane %v210, 3
    %220 = vmatpush.msra.mxu0 %v206
    %221 = vmatpush.msra.mxu0 %v202
    %222 = vmatpush.msra.mxu0 %v198
    %223 = vmatpush.msra.mxu0 %v194
    %224 = vmatpush.msra.mxu0 %v190
    %225 = vmatpush.msra.mxu0 %v186
    %226 = vmatpush.msra.mxu0 %v182
    %227 = vmatpush.msra.mxu0 %v178
    %228 = vmatpush.msra.mxu0 %v174
    %229 = vmatpush.msra.mxu0 %v170
    %230 = vmatpush.msra.mxu0 %v166
    %231 = vmatpush.msra.mxu0 %v162
    %232 = vmatpush.msra.mxu0 %v158
    %233 = vmatpush.msra.mxu0 %v154
    %234 = vmatpush.msra.mxu0 %v150
    %235 = vmatpush.msra.mxu0 %v146
    %236 = vmatmul.f32.gmra.mxu0 %v145
    %v237 = vpop.f32.mrf.mxu0
    %v238 = vadd.f32 %v212, %v237
    %239 = vdwg.mxu0
    %240 = vmatpush.msra.mxu0 %v207
    %241 = vmatpush.msra.mxu0 %v203
    %242 = vmatpush.msra.mxu0 %v199
    %243 = vmatpush.msra.mxu0 %v195
    %244 = vmatpush.msra.mxu0 %v191
    %245 = vmatpush.msra.mxu0 %v187
    %246 = vmatpush.msra.mxu0 %v183
    %247 = vmatpush.msra.mxu0 %v179
    %248 = vmatpush.msra.mxu0 %v175
    %249 = vmatpush.msra.mxu0 %v171
    %250 = vmatpush.msra.mxu0 %v167
    %251 = vmatpush.msra.mxu0 %v163
    %252 = vmatpush.msra.mxu0 %v159
    %253 = vmatpush.msra.mxu0 %v155
    %254 = vmatpush.msra.mxu0 %v151
    %255 = vmatpush.msra.mxu0 %v147
    %256 = vmatmul.f32.gmra.mxu0 %v145
    %v257 = vpop.f32.mrf.mxu0
    %v258 = vadd.f32 %v213, %v257
    %259 = vdwg.mxu0
    %260 = vmatpush.msra.mxu0 %v208
    %261 = vmatpush.msra.mxu0 %v204
    %262 = vmatpush.msra.mxu0 %v200
    %263 = vmatpush.msra.mxu0 %v196
    %264 = vmatpush.msra.mxu0 %v192
    %265 = vmatpush.msra.mxu0 %v188
    %266 = vmatpush.msra.mxu0 %v184
    %267 = vmatpush.msra.mxu0 %v180
    %268 = vmatpush.msra.mxu0 %v176
    %269 = vmatpush.msra.mxu0 %v172
    %270 = vmatpush.msra.mxu0 %v168
    %271 = vmatpush.msra.mxu0 %v164
    %272 = vmatpush.msra.mxu0 %v160
    %273 = vmatpush.msra.mxu0 %v156
    %274 = vmatpush.msra.mxu0 %v152
    %275 = vmatpush.msra.mxu0 %v148
    %276 = vmatmul.f32.gmra.mxu0 %v145
    %v277 = vpop.f32.mrf.mxu0
    %v278 = vadd.f32 %v214, %v277
    %279 = vdwg.mxu0
    %280 = vmatpush.msra.mxu0 %v209
    %281 = vmatpush.msra.mxu0 %v205
    %282 = vmatpush.msra.mxu0 %v201
    %283 = vmatpush.msra.mxu0 %v197
    %284 = vmatpush.msra.mxu0 %v193
    %285 = vmatpush.msra.mxu0 %v189
    %286 = vmatpush.msra.mxu0 %v185
    %287 = vmatpush.msra.mxu0 %v181
    %288 = vmatpush.msra.mxu0 %v177
    %289 = vmatpush.msra.mxu0 %v173
    %290 = vmatpush.msra.mxu0 %v169
    %291 = vmatpush.msra.mxu0 %v165
    %292 = vmatpush.msra.mxu0 %v161
    %293 = vmatpush.msra.mxu0 %v157
    %294 = vmatpush.msra.mxu0 %v153
    %295 = vmatpush.msra.mxu0 %v149
    %296 = vmatmul.f32.gmra.mxu0 %v145
    %v297 = vpop.f32.mrf.mxu0
    %v298 = vadd.f32 %v215, %v297
    %299 = vdwg.mxu0
    %v300 = vld [vmem:[#allocation2] sm:$0x3]
    %v301 = vadd.f32 %v300, %v238
    %v302 = vsel %vm137, %v301, -inf
    %303 = vmax.xlane.f32.xlu0 %v302
    %v304 = vpop.xlane.xlu0 %303
    %v305 = vsub.f32 %v301, %v304
    %v306 = vmul.f32 %v305, 1.442695
    %v307 = vpow.pop %v306
    %v308 = vsel %vm137, %v307, 0.0
    %309 = vadd.xlane.f32.xlu0 %v308
    %v310 = vpop.xlane.xlu0 %309
    %v311 = vrcp.pop %v310
    %v312 = vmul.f32 %v310, %v311
    %v313 = vsub.f32 1.0, %v312
    %v314 = vmul.f32 %v311, %v313
    %v315 = vadd.f32 %v311, %v314
    %vm316 = vweird.f32 %v310
    %vm317 = vweird.f32 %v311
    %vm318 = vmor %vm316, %vm317
    %v319 = vsel %vm318, %v311, %v315
    %v320 = vand.u32 2147483647, %v310
    %vm321 = vcmp.eq.f32.partialorder %v320, 8.507059e+37
    %v322 = vand.u32 %v310, 2147483648
    %v323 = vor.u32 1.1754944e-38, %v322
    %v324 = vsel %vm321, %v323, %v319
    %v325 = vmul.f32 %v307, %v324
    %326 = vst [vmem:[#allocation10] sm:$0x1] %v325
    %v327 = vld [vmem:[%s2] sm:$0xff]
    %v328 = vld [vmem:[%s2 + $0x8] sm:$0xff]
    %v329 = vld [vmem:[%s2 + $0x10] sm:$0xff]
    %v330 = vld [vmem:[%s2 + $0x18] sm:$0xff]
    %v331 = vld [vmem:[%s2 + $0x20] sm:$0xff]
    %v332 = vld [vmem:[%s2 + $0x28] sm:$0xff]
    %v333 = vld [vmem:[%s2 + $0x30] sm:$0xff]
    %v334 = vld [vmem:[%s2 + $0x38] sm:$0xff]
    %v335 = vld [vmem:[%s2 + $0x40] sm:$0xff]
    %v336 = vld [vmem:[%s2 + $0x48] sm:$0xff]
    %v337 = vld [vmem:[%s2 + $0x50] sm:$0xff]
    %v338 = vld [vmem:[%s2 + $0x58] sm:$0xff]
    %v339 = vld [vmem:[%s2 + $0x60] sm:$0xff]
    %v340 = vld [vmem:[%s2 + $0x68] sm:$0xff]
    %v341 = vld [vmem:[%s2 + $0x70] sm:$0xff]
    %v342 = vld [vmem:[%s2 + $0x78] sm:$0xff]
    %343 = vmatpush.msra.mxu0 %v342
    %344 = vmatpush.msra.mxu0 %v341
    %345 = vmatpush.msra.mxu0 %v340
    %346 = vmatpush.msra.mxu0 %v339
    %347 = vmatpush.msra.mxu0 %v338
    %348 = vmatpush.msra.mxu0 %v337
    %349 = vmatpush.msra.mxu0 %v336
    %350 = vmatpush.msra.mxu0 %v335
    %351 = vmatpush.msra.mxu0 %v334
    %352 = vmatpush.msra.mxu0 %v333
    %353 = vmatpush.msra.mxu0 %v332
    %354 = vmatpush.msra.mxu0 %v331
    %355 = vmatpush.msra.mxu0 %v330
    %356 = vmatpush.msra.mxu0 %v329
    %357 = vmatpush.msra.mxu0 %v328
    %358 = vmatpush.msra.mxu0 %v327
    %359 = vmatmul.f32.gmra.mxu0 %v325
    %v360 = vpop.f32.mrf.mxu0
    %v361 = vadd.f32 0.0, %v360
    %362 = vdwg.mxu0
    %v364 = vrot.slane %v300, 1
    %v366 = vadd.f32 %v364, %v361
    %v367 = vmax.f32 %v366, 0.0
    %v368 = vld [vmem:[#allocation7] sm:$0xff]
    %v369 = vld [vmem:[#allocation7 + $0x8] sm:$0xff]
    %v370 = vld [vmem:[#allocation7 + $0x10] sm:$0xff]
    %v371 = vld [vmem:[#allocation7 + $0x18] sm:$0xff]
    %v372 = vld [vmem:[#allocation7 + $0x20] sm:$0xff]
    %v373 = vld [vmem:[#allocation7 + $0x28] sm:$0xff]
    %v374 = vld [vmem:[#allocation7 + $0x30] sm:$0xff]
    %v375 = vld [vmem:[#allocation7 + $0x38] sm:$0xff]
    %v376 = vld [vmem:[#allocation7 + $0x40] sm:$0xff]
    %v377 = vld [vmem:[#allocation7 + $0x48] sm:$0xff]
    %v378 = vld [vmem:[#allocation7 + $0x50] sm:$0xff]
    %v379 = vld [vmem:[#allocation7 + $0x58] sm:$0xff]
    %v380 = vld [vmem:[#allocation7 + $0x60] sm:$0xff]
    %v381 = vld [vmem:[#allocation7 + $0x68] sm:$0xff]
    %v382 = vld [vmem:[#allocation7 + $0x70] sm:$0xff]
    %v383 = vld [vmem:[#allocation7 + $0x78] sm:$0xff]
    %v384 = vld [vmem:[#allocation7 + $0x80] sm:$0xff]
    %v385 = vld [vmem:[#allocation7 + $0x88] sm:$0xff]
    %v386 = vld [vmem:[#allocation7 + $0x90] sm:$0xff]
    %v387 = vld [vmem:[#allocation7 + $0x98] sm:$0xff]
    %v388 = vld [vmem:[#allocation7 + $0xa0] sm:$0xff]
    %v389 = vld [vmem:[#allocation7 + $0xa8] sm:$0xff]
    %v390 = vld [vmem:[#allocation7 + $0xb0] sm:$0xff]
    %v391 = vld [vmem:[#allocation7 + $0xb8] sm:$0xff]
    %v392 = vld [vmem:[#allocation7 + $0xc0] sm:$0xff]
    %v393 = vld [vmem:[#allocation7 + $0xc8] sm:$0xff]
    %v394 = vld [vmem:[#allocation7 + $0xd0] sm:$0xff]
    %v395 = vld [vmem:[#allocation7 + $0xd8] sm:$0xff]
    %v396 = vld [vmem:[#allocation7 + $0xe0] sm:$0xff]
    %v397 = vld [vmem:[#allocation7 + $0xe8] sm:$0xff]
    %v398 = vld [vmem:[#allocation7 + $0xf0] sm:$0xff]
    %v399 = vld [vmem:[#allocation7 + $0xf8] sm:$0xff]
    %v400 = vld [vmem:[#allocation7 + $0x100] sm:$0xff]
    %v401 = vld [vmem:[#allocation7 + $0x108] sm:$0xff]
    %v402 = vld [vmem:[#allocation7 + $0x110] sm:$0xff]
    %v403 = vld [vmem:[#allocation7 + $0x118] sm:$0xff]
    %v404 = vld [vmem:[#allocation7 + $0x120] sm:$0xff]
    %v405 = vld [vmem:[#allocation7 + $0x128] sm:$0xff]
    %v406 = vld [vmem:[#allocation7 + $0x130] sm:$0xff]
    %v407 = vld [vmem:[#allocation7 + $0x138] sm:$0xff]
    %v408 = vld [vmem:[#allocation7 + $0x140] sm:$0xff]
    %v409 = vld [vmem:[#allocation7 + $0x148] sm:$0xff]
    %v410 = vld [vmem:[#allocation7 + $0x150] sm:$0xff]
    %v411 = vld [vmem:[#allocation7 + $0x158] sm:$0xff]
    %v412 = vld [vmem:[#allocation7 + $0x160] sm:$0xff]
    %v413 = vld [vmem:[#allocation7 + $0x168] sm:$0xff]
    %v414 = vld [vmem:[#allocation7 + $0x170] sm:$0xff]
    %v415 = vld [vmem:[#allocation7 + $0x178] sm:$0xff]
    %v416 = vld [vmem:[%s8] sm:$0x7]
    %v418 = vperm.slane %v416, 0
    %v419 = vperm.slane %v416, 1
    %v420 = vperm.slane %v416, 2
    %424 = vmatpush.msra.mxu0 %v413
    %425 = vmatpush.msra.mxu0 %v410
    %426 = vmatpush.msra.mxu0 %v407
    %427 = vmatpush.msra.mxu0 %v404
    %428 = vmatpush.msra.mxu0 %v401
    %429 = vmatpush.msra.mxu0 %v398
    %430 = vmatpush.msra.mxu0 %v395
    %431 = vmatpush.msra.mxu0 %v392
    %432 = vmatpush.msra.mxu0 %v389
    %433 = vmatpush.msra.mxu0 %v386
    %434 = vmatpush.msra.mxu0 %v383
    %435 = vmatpush.msra.mxu0 %v380
    %436 = vmatpush.msra.mxu0 %v377
    %437 = vmatpush.msra.mxu0 %v374
    %438 = vmatpush.msra.mxu0 %v371
    %439 = vmatpush.msra.mxu0 %v368
    %440 = vmatmul.f32.gmra.mxu0 %v367
    %v441 = vpop.f32.mrf.mxu0
    %v442 = vadd.f32 %v418, %v441
    %443 = vdwg.mxu0
    %444 = vmatpush.msra.mxu0 %v414
    %445 = vmatpush.msra.mxu0 %v411
    %446 = vmatpush.msra.mxu0 %v408
    %447 = vmatpush.msra.mxu0 %v405
    %448 = vmatpush.msra.mxu0 %v402
    %449 = vmatpush.msra.mxu0 %v399
    %450 = vmatpush.msra.mxu0 %v396
    %451 = vmatpush.msra.mxu0 %v393
    %452 = vmatpush.msra.mxu0 %v390
    %453 = vmatpush.msra.mxu0 %v387
    %454 = vmatpush.msra.mxu0 %v384
    %455 = vmatpush.msra.mxu0 %v381
    %456 = vmatpush.msra.mxu0 %v378
    %457 = vmatpush.msra.mxu0 %v375
    %458 = vmatpush.msra.mxu0 %v372
    %459 = vmatpush.msra.mxu0 %v369
    %460 = vmatmul.f32.gmra.mxu0 %v367
    %v461 = vpop.f32.mrf.mxu0
    %v462 = vadd.f32 %v419, %v461
    %463 = vdwg.mxu0
    %464 = vmatpush.msra.mxu0 %v415
    %465 = vmatpush.msra.mxu0 %v412
    %466 = vmatpush.msra.mxu0 %v409
    %467 = vmatpush.msra.mxu0 %v406
    %468 = vmatpush.msra.mxu0 %v403
    %469 = vmatpush.msra.mxu0 %v400
    %470 = vmatpush.msra.mxu0 %v397
    %471 = vmatpush.msra.mxu0 %v394
    %472 = vmatpush.msra.mxu0 %v391
    %473 = vmatpush.msra.mxu0 %v388
    %474 = vmatpush.msra.mxu0 %v385
    %475 = vmatpush.msra.mxu0 %v382
    %476 = vmatpush.msra.mxu0 %v379
    %477 = vmatpush.msra.mxu0 %v376
    %478 = vmatpush.msra.mxu0 %v373
    %479 = vmatpush.msra.mxu0 %v370
    %480 = vmatmul.f32.gmra.mxu0 %v367
    %v481 = vpop.f32.mrf.mxu0
    %v482 = vadd.f32 %v420, %v481
    %483 = vdwg.mxu0
    %v484 = vadd.f32 %v442, %v258
    %v485 = vxor.u32 %v484, 2147483648
    %v486 = vmul.f32 %v485, 1.442695
    %v487 = vpow.pop %v486
    %v488 = vadd.f32 %v487, 1.0
    %v489 = vrcp.pop %v488
    %v490 = vmul.f32 %v488, %v489
    %v491 = vsub.f32 1.0, %v490
    %v492 = vmul.f32 %v489, %v491
    %v493 = vadd.f32 %v489, %v492
    %vm494 = vweird.f32 %v488
    %vm495 = vweird.f32 %v489
    %vm496 = vmor %vm494, %vm495
    %v497 = vsel %vm496, %v489, %v493
    %v498 = vand.u32 2147483647, %v488
    %vm499 = vcmp.eq.f32.partialorder %v498, 8.507059e+37
    %v500 = vand.u32 %v488, 2147483648
    %v501 = vor.u32 1.1754944e-38, %v500
    %v502 = vsel %vm499, %v501, %v497
    %v503 = vmul.f32 1.0, %v502
    %v504 = vadd.f32 %v462, %v278
    %v505 = vxor.u32 %v504, 2147483648
    %v506 = vmul.f32 %v505, 1.442695
    %v507 = vpow.pop %v506
    %v508 = vadd.f32 %v507, 1.0
    %v509 = vrcp.pop %v508
    %v510 = vmul.f32 %v508, %v509
    %v511 = vsub.f32 1.0, %v510
    %v512 = vmul.f32 %v509, %v511
    %v513 = vadd.f32 %v509, %v512
    %vm514 = vweird.f32 %v508
    %vm515 = vweird.f32 %v509
    %vm516 = vmor %vm514, %vm515
    %v517 = vsel %vm516, %v509, %v513
    %v518 = vand.u32 2147483647, %v508
    %vm519 = vcmp.eq.f32.partialorder %v518, 8.507059e+37
    %v520 = vand.u32 %v508, 2147483648
    %v521 = vor.u32 1.1754944e-38, %v520
    %v522 = vsel %vm519, %v521, %v517
    %v523 = vmul.f32 1.0, %v522
    %v524 = vmul.f32 %v503, %v298
    %v525 = vadd.f32 %v482, %v524
    %v526 = vtanh.pop %v525
    %v527 = vsub.f32 1.0, %v523
    %v528 = vmul.f32 %v527, %v526
    %v529 = vmul.f32 %v523, %v145
    %v530 = vadd.f32 %v528, %v529
    %531 = vst [vmem:[#allocation3] sm:$0x1] %v530
    %532 = vst [vmem:[%s12] sm:$0x1] %v530
    %v533 = vld [vmem:[#allocation3] sm:$0x1]
    %v534 = vld [vmem:[%s9] sm:$0xff]
    %v535 = vld [vmem:[%s9 + $0x8] sm:$0xff]
    %v536 = vld [vmem:[%s9 + $0x10] sm:$0xff]
    %v537 = vld [vmem:[%s9 + $0x18] sm:$0xff]
    %v538 = vld [vmem:[%s9 + $0x20] sm:$0xff]
    %v539 = vld [vmem:[%s9 + $0x28] sm:$0xff]
    %v540 = vld [vmem:[%s9 + $0x30] sm:$0xff]
    %v541 = vld [vmem:[%s9 + $0x38] sm:$0xff]
    %v542 = vld [vmem:[%s9 + $0x40] sm:$0xff]
    %v543 = vld [vmem:[%s9 + $0x48] sm:$0xff]
    %v544 = vld [vmem:[%s9 + $0x50] sm:$0xff]
    %v545 = vld [vmem:[%s9 + $0x58] sm:$0xff]
    %v546 = vld [vmem:[%s9 + $0x60] sm:$0xff]
    %v547 = vld [vmem:[%s9 + $0x68] sm:$0xff]
    %v548 = vld [vmem:[%s9 + $0x70] sm:$0xff]
    %v549 = vld [vmem:[%s9 + $0x78] sm:$0xff]
    %v550 = vld [vmem:[%s10] sm:$0x1]
    %551 = vmatpush.msra.mxu0 %v549
    %552 = vmatpush.msra.mxu0 %v548
    %553 = vmatpush.msra.mxu0 %v547
    %554 = vmatpush.msra.mxu0 %v546
    %555 = vmatpush.msra.mxu0 %v545
    %556 = vmatpush.msra.mxu0 %v544
    %557 = vmatpush.msra.mxu0 %v543
    %558 = vmatpush.msra.mxu0 %v542
    %559 = vmatpush.msra.mxu0 %v541
    %560 = vmatpush.msra.mxu0 %v540
    %561 = vmatpush.msra.mxu0 %v539
    %562 = vmatpush.msra.mxu0 %v538
    %563 = vmatpush.msra.mxu0 %v537
    %564 = vmatpush.msra.mxu0 %v536
    %565 = vmatpush.msra.mxu0 %v535
    %566 = vmatpush.msra.mxu0 %v534
    %567 = vmatmul.f32.gmra.mxu0 %v533
    %v568 = vpop.f32.mrf.mxu0
    %v569 = vadd.f32 %v550, %v568
    %570 = vdwg.mxu0
    %v571 = vsel %vm137, %v569, -inf
    %572 = vmax.xlane.f32.xlu0 %v571
    %v573 = vpop.xlane.xlu0 %572
    %v574 = vsub.f32 %v569, %v573
    %v575 = vmul.f32 %v574, 1.442695
    %v576 = vpow.pop %v575
    %v577 = vsel %vm137, %v576, 0.0
    %578 = vadd.xlane.f32.xlu0 %v577
    %v579 = vpop.xlane.xlu0 %578
    %v580 = vlog2.pop %v579
    %v581 = vmul.f32 %v580, 0.6931472
    %v582 = vadd.f32 %v581, %v573
    %v583 = vsub.f32 %v569, %v582
    %584 = vst [vmem:[#allocation9] sm:$0x1] %v583
    // Predicated region
    $region54: #{attn_decoder_decode.1} parent=1 // pred_check
      _
    $region55: #{attn_decoder_decode.1} parent=1 // pred_check_branch
      %586 = sbr.rel (0) target = $region57
    $region56: #{attn_decoder_decode.1} parent=1 // pred_region
      %588 = vsyncadd [#allocation6], 0
      %s590 = sshll.u32 [#allocation9], 4
      %s591 = int_to_ptr.vmem [resolvable:$true] %s590
      %s592 = sshll.u32 %s11, 4
      %s593 = int_to_ptr.hbm [resolvable:$true] %s592
      %595 = dma.vmem_to_hbm [thread:$0]  %s591, 16, %s593, [#allocation6]
    $region57: #{attn_decoder_decode.1} parent=1 // pred_fallthru
      _
    // Predicated region
    $region58: #{attn_decoder_decode.1} parent=1 // pred_check
      _
    $region59: #{attn_decoder_decode.1} parent=1 // pred_check_branch
      %597 = sbr.rel (0) target = $region61
    $region60: #{attn_decoder_decode.1} parent=1 // pred_region
      _
    $region61: #{attn_decoder_decode.1} parent=1 // pred_fallthru
      _
    // Predicated region
    $region62: #{attn_decoder_decode.1} parent=1 // pred_check
      _
    $region63: #{attn_decoder_decode.1} parent=1 // pred_check_branch
      %599 = sbr.rel (0) target = $region65
    $region64: #{attn_decoder_decode.1} parent=1 // pred_region
      %601 = vsyncadd [#allocation11], 0
      %s603 = sshll.u32 [#allocation10], 4
      %s604 = int_to_ptr.vmem [resolvable:$true] %s603
      %s605 = sshll.u32 %s13, 4
      %s606 = int_to_ptr.hbm [resolvable:$true] %s605
      %608 = dma.vmem_to_hbm [thread:$0]  %s604, 16, %s606, [#allocation11]
    $region65: #{attn_decoder_decode.1} parent=1 // pred_fallthru
      _
    // Predicated region
    $region66: #{attn_decoder_decode.1} parent=1 // pred_check
      _
    $region67: #{attn_decoder_decode.1} parent=1 // pred_check_branch
      %610 = sbr.rel (0) target = $region69
    $region68: #{attn_decoder_decode.1} parent=1 // pred_region
      %612 = dma.done [#allocation6], 16
    $region69: #{attn_decoder_decode.1} parent=1 // pred_fallthru
      _
    // Predicated region
    $region70: #{attn_decoder_decode.1} parent=1 // pred_check
      _
    $region71: #{attn_decoder_decode.1} parent=1 // pred_check_branch
      %614 = sbr.rel (0) target = $region73
    $region72: #{attn_decoder_decode.1} parent=1 // pred_region
      _
    $region73: #{attn_decoder_decode.1} parent=1 // pred_fallthru
      _
    // Predicated region
    $region74: #{attn_decoder_decode.1} parent=1 // pred_check
      _
    $region75: #{attn_decoder_decode.1} parent=1 // pred_check_branch
      %616 = sbr.rel (0) target = $region77
    $region76: #{attn_decoder_decode.1} parent=1 // pred_region
      %618 = dma.done [#allocation11], 16
    $region77: #{attn_decoder_decode.1} parent=1 // pred_fallthru
      _
    %619 = vsyncpa [#allocation5], 1
    %620 = vsyncpa [#allocation8], 1
    %621 = vsyncpa [#allocation6], 1
    %622 = vsyncpa [#allocation11], 1

</llo_original>
